<compile_context>
chip_gen: v7x
topology: tpu7x:2x2x1
jax: 0.10.0
libtpu: 0.0.40
codegen_flags: <defaults>
</compile_context>

<pallas_src>
import functools

import jax
import jax.numpy as jnp
from jax.experimental import pallas as pl
from jax.experimental.pallas import tpu as pltpu


# ---------------------------------------------------------------------------
# Fused Pallas kernel (one program = `samples` batch samples, full network)
# ---------------------------------------------------------------------------

def _fcnn_fused_kernel(x_ref, w_in_ref, b_in_ref, w01_ref, b_ref,
                       w_out_ref, b_out_ref, o_ref, *,
                       dilations, samples, seq_len, matmul_dtype):
    """x_ref:   (2, samples*seq_len)  sample-major packed NCL input
    w_in_ref:   (C, 2)        b_in_ref: (C, 1)
    w01_ref:    (n, 2C, C)    stacked tap-0/tap-1 weights per dilated layer
    b_ref:      (n, C, 1)     per-layer biases
    w_out_ref:  (C, 1)        b_out_ref: (1,) scalar in SMEM
    o_ref:      (1, samples, seq_len)  full-length (untrimmed) sigmoid output
    """
    C = w_in_ref.shape[0]
    Lt = samples * seq_len                      # lane extent of this step

    # ---- input layer: Conv1d(2 -> C, k=1) as two VPU FMAs ------------------
    x = x_ref[...]                              # (2, Lt) — no transpose needed
    w_in = w_in_ref[...]                        # (C, 2)
    h = (w_in[:, 0:1] * x[0:1, :]               # (C,1)*(1,Lt) -> (C, Lt)
         + w_in[:, 1:2] * x[1:2, :]
         + b_in_ref[...])                       # (C, 1) broadcast along lanes

    # ---- dilated Conv1d(C->C, k=2, dilation=2^i) + ReLU ---------------------
    # One stacked (2C, C) @ (C, Lt) MXU matmul per layer; the second tap is
    # aligned AFTER the matmul with an XLU lane roll (matmul inputs stay
    # tile-aligned, no unaligned pre-matmul slices).
    # TODO(synk): if C is raised to 128+, keep h in a VMEM scratch and consume
    # p0 before materializing p1s to cap live vregs (64-vreg file).
    for i, d in enumerate(dilations):
        r = jnp.dot(w01_ref[i], h.astype(matmul_dtype),
                    preferred_element_type=jnp.float32)         # (2C, Lt)
        p0 = r[:C, :]                            # tap 0: uses position t
        p1 = r[C:, :]                            # tap 1: uses position t + d
        # p1s[:, g] = p1[:, (g + d) mod Lt].  Wrap / cross-sample garbage only
        # lands at per-sample positions >= seq_len - cum_dilation, which are
        # never read by later valid positions and are trimmed in the wrapper.
        p1s = pltpu.roll(p1, shift=Lt - d, axis=1)
        h = jnp.maximum(p0 + p1s + b_ref[i], 0.0)

    # ---- output layer: Conv1d(C -> 1, k=1) + sigmoid ------------------------
    s = jnp.sum(h * w_out_ref[...], axis=0, keepdims=True) + b_out_ref[0]
    y = jax.nn.sigmoid(s)                        # (1, Lt), lane-dense

    # Lane-dense full-seq_len store, one sublane row per packed sample.
    for b in range(samples):
        o_ref[0, b:b + 1, :] = (
            y[:, b * seq_len:(b + 1) * seq_len].astype(o_ref.dtype))


# ---------------------------------------------------------------------------
# pallas_call wrapper
# ---------------------------------------------------------------------------

def fcnn_forward(params, x_ncl, *, samples_per_step=None,
                 matmul_dtype=jnp.bfloat16):
    """x_ncl: (B, 2, L) float32 (PyTorch NCL) -> (B, 1, L - (2^n - 1))."""
    B, in_ch, L = x_ncl.shape
    assert in_ch == 2
    C = params["w_in"].shape[0]
    n = params["w01"].shape[0]
    dilations = tuple(2 ** i for i in range(n))
    rf = sum(dilations)                    # receptive-field shrink = 2^n - 1
    L_out = L - rf
    assert L_out > 0, "sequence shorter than the receptive field"

    if samples_per_step is None:
        # Default: keep >= 2 grid steps when possible so both of v7x's two
        # TensorCores get work, while still packing samples along the lane
        # axis.  On v5e/v6e (single TC), pass samples_per_step=B to collapse
        # the whole batch into a single step (widest matmuls, zero overhead).
        samples_per_step = max(1, B // 2)
    Bt = samples_per_step
    assert B % Bt == 0, "pad the batch to a multiple of samples_per_step"
    steps = B // Bt
    assert steps == 1 or (Bt * L) % 128 == 0, \
        "lane-axis block must be 128-aligned when the batch is split"

    # Sample-major lane packing: (B, 2, L) -> (2, B*L).  Cheap XLA transpose
    # on a tiny input; presents a dense (channels-on-sublanes) slab in VMEM.
    x_flat = jnp.transpose(x_ncl, (1, 0, 2)).reshape(2, B * L)
    w01 = params["w01"].astype(matmul_dtype)   # bf16 weights -> half-size DMA

    kernel = functools.partial(
        _fcnn_fused_kernel, dilations=dilations, samples=Bt, seq_len=L,
        matmul_dtype=matmul_dtype)

    # TODO(synk): for very long sequences, tile L with a sum(dilations) halo on
    # a second parallel grid axis; size the tile against the per-generation
    # VMEM (64 MiB on v7x vs 128 MiB on v5e/v6e) and set vmem_limit_bytes.
    out = pl.pallas_call(
        kernel,
        out_shape=jax.ShapeDtypeStruct((steps, Bt, L), jnp.float32),
        grid=(steps,),
        in_specs=[
            pl.BlockSpec((2, Bt * L), lambda s: (0, s)),        # packed input
            # Constant index_maps: blocks are revisited across the grid, so
            # the pipeline elides re-DMA and the weights stay VMEM-resident.
            pl.BlockSpec((C, 2), lambda s: (0, 0)),             # w_in
            pl.BlockSpec((C, 1), lambda s: (0, 0)),             # b_in
            pl.BlockSpec((n, 2 * C, C), lambda s: (0, 0, 0)),   # stacked taps
            pl.BlockSpec((n, C, 1), lambda s: (0, 0, 0)),       # layer biases
            pl.BlockSpec((C, 1), lambda s: (0, 0)),             # w_out
            pl.BlockSpec(memory_space=pltpu.MemorySpace.SMEM),  # b_out scalar
        ],
        out_specs=pl.BlockSpec((1, Bt, L), lambda s: (s, 0, 0)),
        compiler_params=pltpu.CompilerParams(
            dimension_semantics=("parallel",)),
    )(x_flat, params["w_in"], params["b_in"], w01, params["b"],
      params["w_out"], params["b_out"])

    # Full-L lane-dense store in-kernel; trim the invalid tail (= rf) here.
    return out.reshape(B, 1, L)[:, :, :L_out]


# ---------------------------------------------------------------------------
# Parameter init (shapes mirror the PyTorch module; kaiming-normal-ish)
# ---------------------------------------------------------------------------

def init_fcnn_params(key, n_channels, n_conv_layers):
    C = n_channels

    def kaiming(k, shape, fan_in):
        return jnp.sqrt(2.0 / fan_in) * jax.random.normal(k, shape, jnp.float32)

    keys = jax.random.split(key, 2 + n_conv_layers)
    params = {
        # input_layer: Conv1d(2 -> C, k=1); torch weight (C, 2, 1) -> (C, 2)
        "w_in": kaiming(keys[0], (C, 2), fan_in=2),
        "b_in": jnp.full((C, 1), 0.001, jnp.float32),
        # output_layer: Conv1d(C -> 1, k=1); torch weight (1, C, 1) -> (C, 1)
        "w_out": kaiming(keys[1], (C, 1), fan_in=C),
        "b_out": jnp.full((1,), 0.001, jnp.float32),      # scalar (SMEM)
    }
    w01 = []
    for i in range(n_conv_layers):
        # Conv1d(C -> C, k=2, dilation=2^i); torch weight (C, C, 2).
        w = kaiming(keys[2 + i], (C, C, 2), fan_in=2 * C)
        # Stack taps: rows [0:C] = tap-0 (position t), [C:2C] = tap-1 (t + d).
        w01.append(jnp.concatenate([w[:, :, 0], w[:, :, 1]], axis=0))  # (2C, C)
    params["w01"] = jnp.stack(w01)                                     # (n,2C,C)
    params["b"] = jnp.full((n_conv_layers, C, 1), 0.001, jnp.float32)
    return params


# ---------------------------------------------------------------------------
# Pure-JAX reference (true shrinking-length conv semantics) for verification
# ---------------------------------------------------------------------------

def fcnn_forward_ref(params, x_ncl):
    hp = jax.lax.Precision.HIGHEST
    C = params["w_in"].shape[0]
    n = params["w01"].shape[0]
    h = jnp.einsum("ck,bkl->bcl", params["w_in"], x_ncl,
                   precision=hp) + params["b_in"][None]
    for i in range(n):
        d = 2 ** i
        w0 = params["w01"][i][:C]
        w1 = params["w01"][i][C:]
        l_valid = h.shape[2] - d
        y = (jnp.einsum("oc,bcl->bol", w0, h[:, :, :l_valid], precision=hp)
             + jnp.einsum("oc,bcl->bol", w1, h[:, :, d:], precision=hp)
             + params["b"][i][None])
        h = jnp.maximum(y, 0.0)
    out = jnp.einsum("co,bcl->bol", params["w_out"], h,
                     precision=hp) + params["b_out"][0]
    return jax.nn.sigmoid(out)


if __name__ == "__main__":
    B = 2
    N_CHANNELS = 32
    N_CONV_LAYERS = 4          # receptive-field shrink = 2^4 - 1 = 15
    L = 128                    # lane-aligned; output length = 128 - 15 = 113

    key = jax.random.PRNGKey(0)
    k_params, k_x = jax.random.split(key)

    params = init_fcnn_params(k_params, N_CHANNELS, N_CONV_LAYERS)
    x = jax.random.normal(k_x, (B, 2, L), dtype=jnp.float32)

    ref = jax.block_until_ready(fcnn_forward_ref(params, x))

    # f32 MXU path, batch collapsed to a single grid step (lane axis = B*L):
    # strict numerical check against the HIGHEST-precision reference.
    out_f32 = jax.block_until_ready(
        fcnn_forward(params, x, samples_per_step=B, matmul_dtype=jnp.float32))
    # Default path: bf16 MXU operands + 2-step parallel grid (feeds both v7x
    # TensorCores); tolerance loosened deliberately for bf16 accumulation.
    out_bf16 = jax.block_until_ready(fcnn_forward(params, x))

    L_out = L - (2 ** N_CONV_LAYERS - 1)
    assert out_f32.shape == (B, 1, L_out), out_f32.shape
    assert out_bf16.shape == (B, 1, L_out), out_bf16.shape
    assert jnp.allclose(out_f32, ref, atol=1e-4, rtol=1e-4), \
        float(jnp.max(jnp.abs(out_f32 - ref)))
    assert jnp.allclose(out_bf16, ref, atol=3e-2, rtol=3e-2), \
        float(jnp.max(jnp.abs(out_bf16 - ref)))
    print("KERNEL_OK")
</pallas_src>

<mosaic_0001>
module attributes {stable_mosaic.version = 11 : i64} {
  func.func @_fcnn_fused_kernel(%arg0: i32, %arg1: memref<2x256xf32, #tpu.memory_space<vmem>>, %arg2: memref<32x2xf32, #tpu.memory_space<vmem>>, %arg3: memref<32x1xf32, #tpu.memory_space<vmem>>, %arg4: memref<4x64x32xf32, #tpu.memory_space<vmem>>, %arg5: memref<4x32x1xf32, #tpu.memory_space<vmem>>, %arg6: memref<32x1xf32, #tpu.memory_space<vmem>>, %arg7: memref<1xf32, #tpu.memory_space<smem>>, %arg8: memref<1x2x128xf32, #tpu.memory_space<vmem>>) attributes {dimension_semantics = [#tpu.dimension_semantics<parallel>], iteration_bounds = array<i64: 1>, scalar_prefetch = 0 : i64, scratch_operands = 0 : i64, tpu.core_type = #tpu.core_type<tc>, window_params = [{transform_indices = @transform_0, window_bounds = array<i64: 2, 256>}, {pipeline_mode = #tpu.pipeline_mode<synchronous>, transform_indices = @transform_1, window_bounds = array<i64: 32, 2>}, {pipeline_mode = #tpu.pipeline_mode<synchronous>, transform_indices = @transform_2, window_bounds = array<i64: 32, 1>}, {pipeline_mode = #tpu.pipeline_mode<synchronous>, transform_indices = @transform_3, window_bounds = array<i64: 4, 64, 32>}, {pipeline_mode = #tpu.pipeline_mode<synchronous>, transform_indices = @transform_4, window_bounds = array<i64: 4, 32, 1>}, {pipeline_mode = #tpu.pipeline_mode<synchronous>, transform_indices = @transform_5, window_bounds = array<i64: 32, 1>}, {transform_indices = @transform_6, window_bounds = array<i64: 1>}, {transform_indices = @transform_7, window_bounds = array<i64: 1, 2, 128>}]} {
    %c0 = arith.constant 0 : index
    %c0_0 = arith.constant 0 : index
    %0 = vector.load %arg1[%c0, %c0_0] : memref<2x256xf32, #tpu.memory_space<vmem>>, vector<2x256xf32>
    %c0_1 = arith.constant 0 : index
    %c0_2 = arith.constant 0 : index
    %1 = vector.load %arg2[%c0_1, %c0_2] : memref<32x2xf32, #tpu.memory_space<vmem>>, vector<32x2xf32>
    %2 = vector.extract_strided_slice %1 {offsets = [0, 0], sizes = [32, 1], strides = [1, 1]} : vector<32x2xf32> to vector<32x1xf32>
    %3 = vector.extract_strided_slice %0 {offsets = [0, 0], sizes = [1, 256], strides = [1, 1]} : vector<2x256xf32> to vector<1x256xf32>
    %4 = vector.broadcast %2 : vector<32x1xf32> to vector<32x256xf32>
    %5 = vector.broadcast %3 : vector<1x256xf32> to vector<32x256xf32>
    %6 = arith.mulf %4, %5 : vector<32x256xf32>
    %7 = vector.extract_strided_slice %1 {offsets = [0, 1], sizes = [32, 1], strides = [1, 1]} : vector<32x2xf32> to vector<32x1xf32>
    %8 = vector.extract_strided_slice %0 {offsets = [1, 0], sizes = [1, 256], strides = [1, 1]} : vector<2x256xf32> to vector<1x256xf32>
    %9 = vector.broadcast %7 : vector<32x1xf32> to vector<32x256xf32>
    %10 = vector.broadcast %8 : vector<1x256xf32> to vector<32x256xf32>
    %11 = arith.mulf %9, %10 : vector<32x256xf32>
    %12 = arith.addf %6, %11 : vector<32x256xf32>
    %c0_3 = arith.constant 0 : index
    %c0_4 = arith.constant 0 : index
    %13 = vector.load %arg3[%c0_3, %c0_4] : memref<32x1xf32, #tpu.memory_space<vmem>>, vector<32x1xf32>
    %14 = vector.broadcast %13 : vector<32x1xf32> to vector<32x256xf32>
    %15 = arith.addf %12, %14 : vector<32x256xf32>
    %c0_5 = arith.constant 0 : index
    %c0_6 = arith.constant 0 : index
    %c0_7 = arith.constant 0 : index
    %16 = vector.load %arg4[%c0_5, %c0_6, %c0_7] : memref<4x64x32xf32, #tpu.memory_space<vmem>>, vector<1x64x32xf32>
    %17 = vector.shape_cast %16 : vector<1x64x32xf32> to vector<64x32xf32>
    %cst = arith.constant dense<0.000000e+00> : vector<64x256xf32>
    %18 = tpu.matmul %17, %15, %cst {dimension_numbers = #tpu.dot_dimension_numbers<[1], [0], [0], [1], [0, 0, 1, 1], [], []>} : vector<64x32xf32>, vector<32x256xf32>, vector<64x256xf32> -> vector<64x256xf32>
    %19 = vector.extract_strided_slice %18 {offsets = [0, 0], sizes = [32, 256], strides = [1, 1]} : vector<64x256xf32> to vector<32x256xf32>
    %20 = vector.extract_strided_slice %18 {offsets = [32, 0], sizes = [32, 256], strides = [1, 1]} : vector<64x256xf32> to vector<32x256xf32>
    %c255_i32 = arith.constant 255 : i32
    %21 = tpu.dynamic_rotate %20 by %c255_i32 dim 1 : vector<32x256xf32>, i32 -> vector<32x256xf32>
    %22 = arith.addf %19, %21 : vector<32x256xf32>
    %c0_8 = arith.constant 0 : index
    %c0_9 = arith.constant 0 : index
    %c0_10 = arith.constant 0 : index
    %23 = vector.load %arg5[%c0_8, %c0_9, %c0_10] : memref<4x32x1xf32, #tpu.memory_space<vmem>>, vector<1x32x1xf32>
    %24 = vector.shape_cast %23 : vector<1x32x1xf32> to vector<32x1xf32>
    %25 = vector.broadcast %24 : vector<32x1xf32> to vector<32x256xf32>
    %26 = arith.addf %22, %25 : vector<32x256xf32>
    %cst_11 = arith.constant 0.000000e+00 : f32
    %27 = vector.broadcast %cst_11 : f32 to vector<32x256xf32>
    %28 = arith.maximumf %26, %27 : vector<32x256xf32>
    %c1 = arith.constant 1 : index
    %c0_12 = arith.constant 0 : index
    %c0_13 = arith.constant 0 : index
    %29 = vector.load %arg4[%c1, %c0_12, %c0_13] : memref<4x64x32xf32, #tpu.memory_space<vmem>>, vector<1x64x32xf32>
    %30 = vector.shape_cast %29 : vector<1x64x32xf32> to vector<64x32xf32>
    %cst_14 = arith.constant dense<0.000000e+00> : vector<64x256xf32>
    %31 = tpu.matmul %30, %28, %cst_14 {dimension_numbers = #tpu.dot_dimension_numbers<[1], [0], [0], [1], [0, 0, 1, 1], [], []>} : vector<64x32xf32>, vector<32x256xf32>, vector<64x256xf32> -> vector<64x256xf32>
    %32 = vector.extract_strided_slice %31 {offsets = [0, 0], sizes = [32, 256], strides = [1, 1]} : vector<64x256xf32> to vector<32x256xf32>
    %33 = vector.extract_strided_slice %31 {offsets = [32, 0], sizes = [32, 256], strides = [1, 1]} : vector<64x256xf32> to vector<32x256xf32>
    %c254_i32 = arith.constant 254 : i32
    %34 = tpu.dynamic_rotate %33 by %c254_i32 dim 1 : vector<32x256xf32>, i32 -> vector<32x256xf32>
    %35 = arith.addf %32, %34 : vector<32x256xf32>
    %c1_15 = arith.constant 1 : index
    %c0_16 = arith.constant 0 : index
    %c0_17 = arith.constant 0 : index
    %36 = vector.load %arg5[%c1_15, %c0_16, %c0_17] : memref<4x32x1xf32, #tpu.memory_space<vmem>>, vector<1x32x1xf32>
    %37 = vector.shape_cast %36 : vector<1x32x1xf32> to vector<32x1xf32>
    %38 = vector.broadcast %37 : vector<32x1xf32> to vector<32x256xf32>
    %39 = arith.addf %35, %38 : vector<32x256xf32>
    %cst_18 = arith.constant 0.000000e+00 : f32
    %40 = vector.broadcast %cst_18 : f32 to vector<32x256xf32>
    %41 = arith.maximumf %39, %40 : vector<32x256xf32>
    %c2 = arith.constant 2 : index
    %c0_19 = arith.constant 0 : index
    %c0_20 = arith.constant 0 : index
    %42 = vector.load %arg4[%c2, %c0_19, %c0_20] : memref<4x64x32xf32, #tpu.memory_space<vmem>>, vector<1x64x32xf32>
    %43 = vector.shape_cast %42 : vector<1x64x32xf32> to vector<64x32xf32>
    %cst_21 = arith.constant dense<0.000000e+00> : vector<64x256xf32>
    %44 = tpu.matmul %43, %41, %cst_21 {dimension_numbers = #tpu.dot_dimension_numbers<[1], [0], [0], [1], [0, 0, 1, 1], [], []>} : vector<64x32xf32>, vector<32x256xf32>, vector<64x256xf32> -> vector<64x256xf32>
    %45 = vector.extract_strided_slice %44 {offsets = [0, 0], sizes = [32, 256], strides = [1, 1]} : vector<64x256xf32> to vector<32x256xf32>
    %46 = vector.extract_strided_slice %44 {offsets = [32, 0], sizes = [32, 256], strides = [1, 1]} : vector<64x256xf32> to vector<32x256xf32>
    %c252_i32 = arith.constant 252 : i32
    %47 = tpu.dynamic_rotate %46 by %c252_i32 dim 1 : vector<32x256xf32>, i32 -> vector<32x256xf32>
    %48 = arith.addf %45, %47 : vector<32x256xf32>
    %c2_22 = arith.constant 2 : index
    %c0_23 = arith.constant 0 : index
    %c0_24 = arith.constant 0 : index
    %49 = vector.load %arg5[%c2_22, %c0_23, %c0_24] : memref<4x32x1xf32, #tpu.memory_space<vmem>>, vector<1x32x1xf32>
    %50 = vector.shape_cast %49 : vector<1x32x1xf32> to vector<32x1xf32>
    %51 = vector.broadcast %50 : vector<32x1xf32> to vector<32x256xf32>
    %52 = arith.addf %48, %51 : vector<32x256xf32>
    %cst_25 = arith.constant 0.000000e+00 : f32
    %53 = vector.broadcast %cst_25 : f32 to vector<32x256xf32>
    %54 = arith.maximumf %52, %53 : vector<32x256xf32>
    %c3 = arith.constant 3 : index
    %c0_26 = arith.constant 0 : index
    %c0_27 = arith.constant 0 : index
    %55 = vector.load %arg4[%c3, %c0_26, %c0_27] : memref<4x64x32xf32, #tpu.memory_space<vmem>>, vector<1x64x32xf32>
    %56 = vector.shape_cast %55 : vector<1x64x32xf32> to vector<64x32xf32>
    %cst_28 = arith.constant dense<0.000000e+00> : vector<64x256xf32>
    %57 = tpu.matmul %56, %54, %cst_28 {dimension_numbers = #tpu.dot_dimension_numbers<[1], [0], [0], [1], [0, 0, 1, 1], [], []>} : vector<64x32xf32>, vector<32x256xf32>, vector<64x256xf32> -> vector<64x256xf32>
    %58 = vector.extract_strided_slice %57 {offsets = [0, 0], sizes = [32, 256], strides = [1, 1]} : vector<64x256xf32> to vector<32x256xf32>
    %59 = vector.extract_strided_slice %57 {offsets = [32, 0], sizes = [32, 256], strides = [1, 1]} : vector<64x256xf32> to vector<32x256xf32>
    %c248_i32 = arith.constant 248 : i32
    %60 = tpu.dynamic_rotate %59 by %c248_i32 dim 1 : vector<32x256xf32>, i32 -> vector<32x256xf32>
    %61 = arith.addf %58, %60 : vector<32x256xf32>
    %c3_29 = arith.constant 3 : index
    %c0_30 = arith.constant 0 : index
    %c0_31 = arith.constant 0 : index
    %62 = vector.load %arg5[%c3_29, %c0_30, %c0_31] : memref<4x32x1xf32, #tpu.memory_space<vmem>>, vector<1x32x1xf32>
    %63 = vector.shape_cast %62 : vector<1x32x1xf32> to vector<32x1xf32>
    %64 = vector.broadcast %63 : vector<32x1xf32> to vector<32x256xf32>
    %65 = arith.addf %61, %64 : vector<32x256xf32>
    %cst_32 = arith.constant 0.000000e+00 : f32
    %66 = vector.broadcast %cst_32 : f32 to vector<32x256xf32>
    %67 = arith.maximumf %65, %66 : vector<32x256xf32>
    %c0_33 = arith.constant 0 : index
    %c0_34 = arith.constant 0 : index
    %68 = vector.load %arg6[%c0_33, %c0_34] : memref<32x1xf32, #tpu.memory_space<vmem>>, vector<32x1xf32>
    %69 = vector.broadcast %68 : vector<32x1xf32> to vector<32x256xf32>
    %70 = arith.mulf %67, %69 : vector<32x256xf32>
    %cst_35 = arith.constant dense<0.000000e+00> : vector<256xf32>
    %71 = vector.multi_reduction <add>, %70, %cst_35 [0] : vector<32x256xf32> to vector<256xf32>
    %72 = vector.shape_cast %71 : vector<256xf32> to vector<1x256xf32>
    %c0_36 = arith.constant 0 : index
    %73 = memref.load %arg7[%c0_36] : memref<1xf32, #tpu.memory_space<smem>>
    %74 = vector.broadcast %73 : f32 to vector<1x256xf32>
    %75 = arith.addf %72, %74 : vector<1x256xf32>
    %76 = arith.negf %75 : vector<1x256xf32>
    %77 = math.exp %76 : vector<1x256xf32>
    %cst_37 = arith.constant 1.000000e+00 : f32
    %78 = vector.broadcast %cst_37 : f32 to vector<1x256xf32>
    %79 = arith.addf %78, %77 : vector<1x256xf32>
    %80 = arith.divf %78, %79 : vector<1x256xf32>
    %81 = vector.extract_strided_slice %80 {offsets = [0, 0], sizes = [1, 128], strides = [1, 1]} : vector<1x256xf32> to vector<1x128xf32>
    %c0_38 = arith.constant 0 : index
    %c0_39 = arith.constant 0 : index
    %c0_40 = arith.constant 0 : index
    %82 = vector.load %arg8[%c0_38, %c0_39, %c0_40] : memref<1x2x128xf32, #tpu.memory_space<vmem>>, vector<1x1x128xf32>
    %83 = vector.shape_cast %82 : vector<1x1x128xf32> to vector<1x128xf32>
    %84 = vector.shape_cast %81 : vector<1x128xf32> to vector<1x1x128xf32>
    tpu.vector_store %arg8[%c0_38, %c0_39, %c0_40], %84 {strides = array<i32>} : memref<1x2x128xf32, #tpu.memory_space<vmem>>, vector<1x1x128xf32>,
    %85 = vector.extract_strided_slice %80 {offsets = [0, 128], sizes = [1, 128], strides = [1, 1]} : vector<1x256xf32> to vector<1x128xf32>
    %c0_41 = arith.constant 0 : index
    %c1_42 = arith.constant 1 : index
    %c0_43 = arith.constant 0 : index
    %86 = vector.load %arg8[%c0_41, %c1_42, %c0_43] : memref<1x2x128xf32, #tpu.memory_space<vmem>>, vector<1x1x128xf32>
    %87 = vector.shape_cast %86 : vector<1x1x128xf32> to vector<1x128xf32>
    %88 = vector.shape_cast %85 : vector<1x128xf32> to vector<1x1x128xf32>
    tpu.vector_store %arg8[%c0_41, %c1_42, %c0_43], %88 {strides = array<i32>} : memref<1x2x128xf32, #tpu.memory_space<vmem>>, vector<1x1x128xf32>,
    return
  }
  func.func @transform_0(%arg0: i32) -> (i32, i32) {
    %c0_i32 = arith.constant 0 : i32
    %c0_i32_0 = arith.constant 0 : i32
    return %c0_i32, %arg0 : i32, i32
  }
  func.func @transform_1(%arg0: i32) -> (i32, i32) {
    %c0_i32 = arith.constant 0 : i32
    %c0_i32_0 = arith.constant 0 : i32
    %c0_i32_1 = arith.constant 0 : i32
    return %c0_i32, %c0_i32_0 : i32, i32
  }
  func.func @transform_2(%arg0: i32) -> (i32, i32) {
    %c0_i32 = arith.constant 0 : i32
    %c0_i32_0 = arith.constant 0 : i32
    %c0_i32_1 = arith.constant 0 : i32
    return %c0_i32, %c0_i32_0 : i32, i32
  }
  func.func @transform_3(%arg0: i32) -> (i32, i32, i32) {
    %c0_i32 = arith.constant 0 : i32
    %c0_i32_0 = arith.constant 0 : i32
    %c0_i32_1 = arith.constant 0 : i32
    %c0_i32_2 = arith.constant 0 : i32
    return %c0_i32, %c0_i32_0, %c0_i32_1 : i32, i32, i32
  }
  func.func @transform_4(%arg0: i32) -> (i32, i32, i32) {
    %c0_i32 = arith.constant 0 : i32
    %c0_i32_0 = arith.constant 0 : i32
    %c0_i32_1 = arith.constant 0 : i32
    %c0_i32_2 = arith.constant 0 : i32
    return %c0_i32, %c0_i32_0, %c0_i32_1 : i32, i32, i32
  }
  func.func @transform_5(%arg0: i32) -> (i32, i32) {
    %c0_i32 = arith.constant 0 : i32
    %c0_i32_0 = arith.constant 0 : i32
    %c0_i32_1 = arith.constant 0 : i32
    return %c0_i32, %c0_i32_0 : i32, i32
  }
  func.func @transform_6(%arg0: i32) -> i32 {
    %c0_i32 = arith.constant 0 : i32
    %c0_i32_0 = arith.constant 0 : i32
    return %c0_i32 : i32
  }
  func.func @transform_7(%arg0: i32) -> (i32, i32, i32) {
    %c0_i32 = arith.constant 0 : i32
    %c0_i32_0 = arith.constant 0 : i32
    %c0_i32_1 = arith.constant 0 : i32
    return %arg0, %c0_i32, %c0_i32_0 : i32, i32, i32
  }
}

</mosaic_0001>

<llo_original>
// kernel: tpu_custom_call.1
$region0: #{tpu_custom_call.1}
  #allocation0 [shape = 'u32[]', space=smem, size = 0x4, offset = 0x4, fixed_abs, tag = 'smem constant byte address 0x4 - core index']
  #allocation1 [shape = 'u32[144,128]{1,0:T(1,128)}', space=vmem, size = 0x12000, scoped, tag = 'internal scratch']
  #allocation2 [shape = 'f32[1]{0:T(128)S(6)}', space=smem, size = 0x200, scoped, tag = 'scoped memory for tpu_custom_call.1']
  %s0 = inlined_call_operand.vmem [shape: f32[2,256], index: 0, kind: input, shape index: {}]
  %s1 = inlined_call_operand.vmem [shape: f32[32,2], index: 1, kind: input, shape index: {}]
  %s2 = inlined_call_operand.vmem [shape: f32[32,1], index: 2, kind: input, shape index: {}]
  %s3 = inlined_call_operand.vmem [shape: f32[4,64,32], index: 3, kind: input, shape index: {}]
  %s4 = inlined_call_operand.vmem [shape: f32[4,32,1], index: 4, kind: input, shape index: {}]
  %s5 = inlined_call_operand.vmem [shape: f32[32,1], index: 5, kind: input, shape index: {}]
  %s6 = inlined_call_operand.<no memory space> [shape: f32[1], index: 6, kind: input, shape index: {}]
  %s7 = inlined_call_operand.hbm [shape: f32[1,2,128], index: 7, kind: output, shape index: {}]
  %s8 = sld [smem:[#allocation0]]
  $region38: #{tpu_custom_call.1} parent=0
    _
  %s10 = ssub.s32 1, %s8
  %s11 = scalar_select 0, %s10, %s8
  %12 = sst [smem:[#allocation2]] %s6
  $region1: #{tpu_custom_call.1} parent=0
    #allocation3 [shape = 'u8[1024]{0}', space=vmem, size = 0x400, scoped, tag = 'output window, operand 0, single buffered']
    #allocation4 [shape = 's32[1]{0}', space=sflag, size = 0x4, scoped, tag = 'scoped memory for tpu_custom_call.1']
    %13 = vsyncpa [#allocation4], 0
    // Predicated region
    $region2: #{tpu_custom_call.1} parent=1 // pred_check
      _
    $region3: #{tpu_custom_call.1} parent=1 // pred_check_branch
      %15 = sbr.rel (0) target = $region5
    $region4: #{tpu_custom_call.1} parent=1 // pred_region
      _
    $region5: #{tpu_custom_call.1} parent=1 // pred_fallthru
      _
    // Predicated region
    $region6: #{tpu_custom_call.1} parent=1 // pred_check
      _
    $region7: #{tpu_custom_call.1} parent=1 // pred_check_branch
      %17 = sbr.rel (0) target = $region9
    $region8: #{tpu_custom_call.1} parent=1 // pred_region
      _
    $region9: #{tpu_custom_call.1} parent=1 // pred_fallthru
      _
    // Predicated region
    $region10: #{tpu_custom_call.1} parent=1 // pred_check
      _
    $region11: #{tpu_custom_call.1} parent=1 // pred_check_branch
      %19 = sbr.rel (0) target = $region13
    $region12: #{tpu_custom_call.1} parent=1 // pred_region
      _
    $region13: #{tpu_custom_call.1} parent=1 // pred_fallthru
      _
    // Predicated region
    $region14: #{tpu_custom_call.1} parent=1 // pred_check
      _
    $region15: #{tpu_custom_call.1} parent=1 // pred_check_branch
      %21 = sbr.rel (0) target = $region17
    $region16: #{tpu_custom_call.1} parent=1 // pred_region
      _
    $region17: #{tpu_custom_call.1} parent=1 // pred_fallthru
      _
    // Predicated region
    $region18: #{tpu_custom_call.1} parent=1 // pred_check
      _
    $region19: #{tpu_custom_call.1} parent=1 // pred_check_branch
      %23 = sbr.rel (0) target = $region21
    $region20: #{tpu_custom_call.1} parent=1 // pred_region
      _
    $region21: #{tpu_custom_call.1} parent=1 // pred_fallthru
      _
    // Predicated region
    $region22: #{tpu_custom_call.1} parent=1 // pred_check
      _
    $region23: #{tpu_custom_call.1} parent=1 // pred_check_branch
      %25 = sbr.rel (0) target = $region25
    $region24: #{tpu_custom_call.1} parent=1 // pred_region
      _
    $region25: #{tpu_custom_call.1} parent=1 // pred_fallthru
      _
    // Predicated region
    $region26: #{tpu_custom_call.1} parent=1 // pred_check
      _
    $region27: #{tpu_custom_call.1} parent=1 // pred_check_branch
      %27 = sbr.rel (0) target = $region29
    $region28: #{tpu_custom_call.1} parent=1 // pred_region
      _
    $region29: #{tpu_custom_call.1} parent=1 // pred_fallthru
      _
    %v28 = vld [vmem:[%s0] sm:$0xf]
    %v29 = vld [vmem:[%s1] sm:$0xff]
    %v30 = vld [vmem:[%s1 + $0x8] sm:$0xff]
    %v31 = vld [vmem:[%s1 + $0x10] sm:$0xff]
    %v32 = vld [vmem:[%s1 + $0x18] sm:$0xff]
    %34 = vset.pattern.permute.xlu0 0
    %35 = vperm.xlu0 %34, %v29
    %v36 = vpop.permute.xlu0 %35
    %39 = vset.pattern.permute.xlu0 0
    %40 = vperm.xlu0 %39, %v30
    %v41 = vpop.permute.xlu0 %40
    %44 = vset.pattern.permute.xlu0 0
    %45 = vperm.xlu0 %44, %v31
    %v46 = vpop.permute.xlu0 %45
    %49 = vset.pattern.permute.xlu0 0
    %50 = vperm.xlu0 %49, %v32
    %v51 = vpop.permute.xlu0 %50
    %v54 = vlaneseq
    %v55 = vshrl.u32 %v54, 7
    %v56 = vsub.s32 0, %v55
    %v57 = vrot.slane %v28, %v56
    %v58 = vlaneseq
    %v59 = vshrl.u32 %v58, 7
    %v60 = vsub.s32 2, %v59
    %v61 = vrot.slane %v28, %v60
    %v64 = vlaneseq
    %v65 = vshrl.u32 %v64, 7
    %v66 = vsub.s32 0, %v65
    %v67 = vrot.slane %v57, %v66
    %v68 = vlaneseq
    %v69 = vshrl.u32 %v68, 7
    %v70 = vsub.s32 0, %v69
    %v71 = vrot.slane %v61, %v70
    %v72 = vmul.f32 %v36, %v67
    %v73 = vmul.f32 %v36, %v71
    %v74 = vmul.f32 %v41, %v67
    %v75 = vmul.f32 %v41, %v71
    %v76 = vmul.f32 %v46, %v67
    %v77 = vmul.f32 %v46, %v71
    %v78 = vmul.f32 %v51, %v67
    %v79 = vmul.f32 %v51, %v71
    %80 = vset.pattern.permute.xlu0 1
    %81 = vperm.xlu0 %80, %v29
    %v82 = vpop.permute.xlu0 %81
    %84 = vset.pattern.permute.xlu0 1
    %85 = vperm.xlu0 %84, %v30
    %v86 = vpop.permute.xlu0 %85
    %88 = vset.pattern.permute.xlu0 1
    %89 = vperm.xlu0 %88, %v31
    %v90 = vpop.permute.xlu0 %89
    %92 = vset.pattern.permute.xlu0 1
    %93 = vperm.xlu0 %92, %v32
    %v94 = vpop.permute.xlu0 %93
    %v96 = vlaneseq
    %v97 = vshrl.u32 %v96, 7
    %v98 = vsub.s32 1, %v97
    %v99 = vrot.slane %v28, %v98
    %v100 = vlaneseq
    %v101 = vshrl.u32 %v100, 7
    %v102 = vsub.s32 3, %v101
    %v103 = vrot.slane %v28, %v102
    %v106 = vlaneseq
    %v107 = vshrl.u32 %v106, 7
    %v108 = vsub.s32 1, %v107
    %v109 = vrot.slane %v99, %v108
    %v110 = vlaneseq
    %v111 = vshrl.u32 %v110, 7
    %v112 = vsub.s32 1, %v111
    %v113 = vrot.slane %v103, %v112
    %v114 = vmul.f32 %v82, %v109
    %v115 = vmul.f32 %v82, %v113
    %v116 = vmul.f32 %v86, %v109
    %v117 = vmul.f32 %v86, %v113
    %v118 = vmul.f32 %v90, %v109
    %v119 = vmul.f32 %v90, %v113
    %v120 = vmul.f32 %v94, %v109
    %v121 = vmul.f32 %v94, %v113
    %v122 = vadd.f32 %v72, %v114
    %v123 = vadd.f32 %v73, %v115
    %v124 = vadd.f32 %v74, %v116
    %v125 = vadd.f32 %v75, %v117
    %v126 = vadd.f32 %v76, %v118
    %v127 = vadd.f32 %v77, %v119
    %v128 = vadd.f32 %v78, %v120
    %v129 = vadd.f32 %v79, %v121
    %v130 = vld [vmem:[%s2] sm:$0xff]
    %v131 = vld [vmem:[%s2 + $0x8] sm:$0xff]
    %v132 = vld [vmem:[%s2 + $0x10] sm:$0xff]
    %v133 = vld [vmem:[%s2 + $0x18] sm:$0xff]
    %135 = vset.pattern.permute.xlu0 0
    %136 = vperm.xlu0 %135, %v130
    %v137 = vpop.permute.xlu0 %136
    %140 = vset.pattern.permute.xlu0 0
    %141 = vperm.xlu0 %140, %v131
    %v142 = vpop.permute.xlu0 %141
    %145 = vset.pattern.permute.xlu0 0
    %146 = vperm.xlu0 %145, %v132
    %v147 = vpop.permute.xlu0 %146
    %150 = vset.pattern.permute.xlu0 0
    %151 = vperm.xlu0 %150, %v133
    %v152 = vpop.permute.xlu0 %151
    %v154 = vadd.f32 %v122, %v137
    %v155 = vadd.f32 %v123, %v137
    %v156 = vadd.f32 %v124, %v142
    %v157 = vadd.f32 %v125, %v142
    %v158 = vadd.f32 %v126, %v147
    %v159 = vadd.f32 %v127, %v147
    %v160 = vadd.f32 %v128, %v152
    %v161 = vadd.f32 %v129, %v152
    %v162 = vld [vmem:[%s3] sm:$0xff]
    %v163 = vld [vmem:[%s3 + $0x8] sm:$0xff]
    %v164 = vld [vmem:[%s3 + $0x10] sm:$0xff]
    %v165 = vld [vmem:[%s3 + $0x18] sm:$0xff]
    %v166 = vld [vmem:[%s3 + $0x20] sm:$0xff]
    %v167 = vld [vmem:[%s3 + $0x28] sm:$0xff]
    %v168 = vld [vmem:[%s3 + $0x30] sm:$0xff]
    %v169 = vld [vmem:[%s3 + $0x38] sm:$0xff]
    %vm170 = vcmask 261120
    %v172 = vsel %vm170, %v162, 0
    %v175 = vsel %vm170, %v163, 0
    %v178 = vsel %vm170, %v164, 0
    %v181 = vsel %vm170, %v165, 0
    %v184 = vsel %vm170, %v166, 0
    %v187 = vsel %vm170, %v167, 0
    %v190 = vsel %vm170, %v168, 0
    %v193 = vsel %vm170, %v169, 0
    %195 = vmatprep.subr.mxu0 %v155
    %196 = vmatpush1.msra.mxu0 %v154
    %197 = vmatprep.subr.mxu0 %v157
    %198 = vmatpush1.msra.mxu0 %v156
    %199 = vmatprep.subr.mxu0 %v159
    %200 = vmatpush1.msra.mxu0 %v158
    %201 = vmatprep.subr.mxu0 %v161
    %202 = vmatpush1.msra.mxu0 %v160
    %203 = vmatprep.subr.mxu0 0.0
    %204 = vmatpush1.msra.mxu0 0.0
    %205 = vmatprep.subr.mxu0 0.0
    %206 = vmatpush1.msra.mxu0 0.0
    %207 = vmatprep.subr.mxu0 0.0
    %208 = vmatpush1.msra.mxu0 0.0
    %209 = vmatprep.subr.mxu0 0.0
    %210 = vmatpush1.msra.mxu0 0.0
    %211 = vmatprep.subr.mxu0 0.0
    %212 = vmatpush1.msra.mxu0 0.0
    %213 = vmatprep.subr.mxu0 0.0
    %214 = vmatpush1.msra.mxu0 0.0
    %215 = vmatprep.subr.mxu0 0.0
    %216 = vmatpush1.msra.mxu0 0.0
    %217 = vmatprep.subr.mxu0 0.0
    %218 = vmatpush1.msra.mxu0 0.0
    %219 = vmatprep.subr.mxu0 0.0
    %220 = vmatpush1.msra.mxu0 0.0
    %221 = vmatprep.subr.mxu0 0.0
    %222 = vmatpush1.msra.mxu0 0.0
    %223 = vmatprep.subr.mxu0 0.0
    %224 = vmatpush1.msra.mxu0 0.0
    %225 = vmatprep.subr.mxu0 0.0
    %226 = vmatpush1.msra.mxu0 0.0
    %227 = vmatprep.subr.mxu0 0.0
    %228 = vmatpush1.msra.mxu0 0.0
    %229 = vmatprep.subr.mxu0 0.0
    %230 = vmatpush1.msra.mxu0 0.0
    %231 = vmatprep.subr.mxu0 0.0
    %232 = vmatpush1.msra.mxu0 0.0
    %233 = vmatprep.subr.mxu0 0.0
    %234 = vmatpush1.msra.mxu0 0.0
    %235 = vmatprep.subr.mxu0 0.0
    %236 = vmatpush1.msra.mxu0 0.0
    %237 = vmatprep.subr.mxu0 0.0
    %238 = vmatpush1.msra.mxu0 0.0
    %239 = vmatprep.subr.mxu0 0.0
    %240 = vmatpush1.msra.mxu0 0.0
    %241 = vmatprep.subr.mxu0 0.0
    %242 = vmatpush1.msra.mxu0 0.0
    %243 = vmatprep.subr.mxu0 0.0
    %244 = vmatpush1.msra.mxu0 0.0
    %245 = vmatprep.subr.mxu0 0.0
    %246 = vmatpush1.msra.mxu0 0.0
    %247 = vmatprep.subr.mxu0 0.0
    %248 = vmatpush1.msra.mxu0 0.0
    %249 = vmatprep.subr.mxu0 0.0
    %250 = vmatpush1.msra.mxu0 0.0
    %251 = vmatprep.subr.mxu0 0.0
    %252 = vmatpush1.msra.mxu0 0.0
    %253 = vmatprep.subr.mxu0 0.0
    %254 = vmatpush1.msra.mxu0 0.0
    %255 = vmatprep.subr.mxu0 0.0
    %256 = vmatpush1.msra.mxu0 0.0
    %257 = vmatprep.subr.mxu0 0.0
    %258 = vmatpush1.msra.mxu0 0.0
    %259 = vmatprep.mubr.f32.mxu0 0.0
    %260 = vmatmul.mubr.f32.gmra.mrb[0].mxu0 %v172
    %v261 = vpop.f32.mrb[0].mxu0
    %v262 = vadd.f32 0.0, %v261
    %v263 = vpop.f32.mrb[0].mxu0
    %v264 = vadd.f32 0.0, %v263
    %265 = vmatprep.mubr.f32.mxu0 0.0
    %266 = vmatmul.mubr.f32.gmra.mrb[0].mxu0 %v175
    %v267 = vpop.f32.mrb[0].mxu0
    %v268 = vadd.f32 0.0, %v267
    %v269 = vpop.f32.mrb[0].mxu0
    %v270 = vadd.f32 0.0, %v269
    %271 = vmatprep.mubr.f32.mxu0 0.0
    %272 = vmatmul.mubr.f32.gmra.mrb[0].mxu0 %v178
    %v273 = vpop.f32.mrb[0].mxu0
    %v274 = vadd.f32 0.0, %v273
    %v275 = vpop.f32.mrb[0].mxu0
    %v276 = vadd.f32 0.0, %v275
    %277 = vmatprep.mubr.f32.mxu0 0.0
    %278 = vmatmul.mubr.f32.gmra.mrb[0].mxu0 %v181
    %v279 = vpop.f32.mrb[0].mxu0
    %v280 = vadd.f32 0.0, %v279
    %v281 = vpop.f32.mrb[0].mxu0
    %v282 = vadd.f32 0.0, %v281
    %283 = vmatprep.mubr.f32.mxu0 0.0
    %284 = vmatmul.mubr.f32.gmra.mrb[0].mxu0 %v184
    %v285 = vpop.f32.mrb[0].mxu0
    %v286 = vadd.f32 0.0, %v285
    %v287 = vpop.f32.mrb[0].mxu0
    %v288 = vadd.f32 0.0, %v287
    %289 = vmatprep.mubr.f32.mxu0 0.0
    %290 = vmatmul.mubr.f32.gmra.mrb[0].mxu0 %v187
    %v291 = vpop.f32.mrb[0].mxu0
    %v292 = vadd.f32 0.0, %v291
    %v293 = vpop.f32.mrb[0].mxu0
    %v294 = vadd.f32 0.0, %v293
    %295 = vmatprep.mubr.f32.mxu0 0.0
    %296 = vmatmul.mubr.f32.gmra.mrb[0].mxu0 %v190
    %v297 = vpop.f32.mrb[0].mxu0
    %v298 = vadd.f32 0.0, %v297
    %v299 = vpop.f32.mrb[0].mxu0
    %v300 = vadd.f32 0.0, %v299
    %301 = vmatprep.mubr.f32.mxu0 0.0
    %302 = vmatmul.mubr.f32.gmra.mrb[0].mxu0 %v193
    %v303 = vpop.f32.mrb[0].mxu0
    %v304 = vadd.f32 0.0, %v303
    %v305 = vpop.f32.mrb[0].mxu0
    %v306 = vadd.f32 0.0, %v305
    %307 = vdwg.mxu0
    %308 = vrot.lane.b32.xlu0 %v286, 127
    %v309 = vpop.permute.xlu0 %308
    %310 = vrot.lane.b32.xlu0 %v292, 127
    %v311 = vpop.permute.xlu0 %310
    %312 = vrot.lane.b32.xlu0 %v298, 127
    %v313 = vpop.permute.xlu0 %312
    %314 = vrot.lane.b32.xlu0 %v304, 127
    %v315 = vpop.permute.xlu0 %314
    %316 = vrot.lane.b32.xlu0 %v288, 127
    %v317 = vpop.permute.xlu0 %316
    %318 = vrot.lane.b32.xlu0 %v294, 127
    %v319 = vpop.permute.xlu0 %318
    %320 = vrot.lane.b32.xlu0 %v300, 127
    %v321 = vpop.permute.xlu0 %320
    %322 = vrot.lane.b32.xlu0 %v306, 127
    %v323 = vpop.permute.xlu0 %322
    %v324 = vlaneseq
    %v325 = vand.u32 %v324, 127
    %vm326 = vcmp.lt.s32.totalorder %v325, 127
    %v327 = vsel %vm326, %v309, %v317
    %v328 = vsel %vm326, %v311, %v319
    %v329 = vsel %vm326, %v313, %v321
    %v330 = vsel %vm326, %v315, %v323
    %v331 = vsel %vm326, %v317, %v309
    %v332 = vsel %vm326, %v319, %v311
    %v333 = vsel %vm326, %v321, %v313
    %v334 = vsel %vm326, %v323, %v315
    %v335 = vadd.f32 %v262, %v327
    %v336 = vadd.f32 %v264, %v331
    %v337 = vadd.f32 %v268, %v328
    %v338 = vadd.f32 %v270, %v332
    %v339 = vadd.f32 %v274, %v329
    %v340 = vadd.f32 %v276, %v333
    %v341 = vadd.f32 %v280, %v330
    %v342 = vadd.f32 %v282, %v334
    %v343 = vld [vmem:[%s4] sm:$0xff]
    %v344 = vld [vmem:[%s4 + $0x8] sm:$0xff]
    %v345 = vld [vmem:[%s4 + $0x10] sm:$0xff]
    %v346 = vld [vmem:[%s4 + $0x18] sm:$0xff]
    %348 = vset.pattern.permute.xlu0 0
    %349 = vperm.xlu0 %348, %v343
    %v350 = vpop.permute.xlu0 %349
    %353 = vset.pattern.permute.xlu0 0
    %354 = vperm.xlu0 %353, %v344
    %v355 = vpop.permute.xlu0 %354
    %358 = vset.pattern.permute.xlu0 0
    %359 = vperm.xlu0 %358, %v345
    %v360 = vpop.permute.xlu0 %359
    %363 = vset.pattern.permute.xlu0 0
    %364 = vperm.xlu0 %363, %v346
    %v365 = vpop.permute.xlu0 %364
    %v367 = vadd.f32 %v335, %v350
    %v368 = vadd.f32 %v336, %v350
    %v369 = vadd.f32 %v337, %v355
    %v370 = vadd.f32 %v338, %v355
    %v371 = vadd.f32 %v339, %v360
    %v372 = vadd.f32 %v340, %v360
    %v373 = vadd.f32 %v341, %v365
    %v374 = vadd.f32 %v342, %v365
    %v375 = vmax.f32 %v367, 0.0
    %v376 = vmax.f32 %v368, 0.0
    %v377 = vmax.f32 %v369, 0.0
    %v378 = vmax.f32 %v370, 0.0
    %v379 = vmax.f32 %v371, 0.0
    %v380 = vmax.f32 %v372, 0.0
    %v381 = vmax.f32 %v373, 0.0
    %v382 = vmax.f32 %v374, 0.0
    %s383 = scalar_lea.vmem %s3, 64
    %v384 = vld [vmem:[%s383] sm:$0xff]
    %v385 = vld [vmem:[%s383 + $0x8] sm:$0xff]
    %v386 = vld [vmem:[%s383 + $0x10] sm:$0xff]
    %v387 = vld [vmem:[%s383 + $0x18] sm:$0xff]
    %v388 = vld [vmem:[%s383 + $0x20] sm:$0xff]
    %v389 = vld [vmem:[%s383 + $0x28] sm:$0xff]
    %v390 = vld [vmem:[%s383 + $0x30] sm:$0xff]
    %v391 = vld [vmem:[%s383 + $0x38] sm:$0xff]
    %v393 = vsel %vm170, %v384, 0
    %v396 = vsel %vm170, %v385, 0
    %v399 = vsel %vm170, %v386, 0
    %v402 = vsel %vm170, %v387, 0
    %v405 = vsel %vm170, %v388, 0
    %v408 = vsel %vm170, %v389, 0
    %v411 = vsel %vm170, %v390, 0
    %v414 = vsel %vm170, %v391, 0
    %416 = vmatprep.subr.mxu0 %v376
    %417 = vmatpush1.msra.mxu0 %v375
    %418 = vmatprep.subr.mxu0 %v378
    %419 = vmatpush1.msra.mxu0 %v377
    %420 = vmatprep.subr.mxu0 %v380
    %421 = vmatpush1.msra.mxu0 %v379
    %422 = vmatprep.subr.mxu0 %v382
    %423 = vmatpush1.msra.mxu0 %v381
    %424 = vmatprep.subr.mxu0 0.0
    %425 = vmatpush1.msra.mxu0 0.0
    %426 = vmatprep.subr.mxu0 0.0
    %427 = vmatpush1.msra.mxu0 0.0
    %428 = vmatprep.subr.mxu0 0.0
    %429 = vmatpush1.msra.mxu0 0.0
    %430 = vmatprep.subr.mxu0 0.0
    %431 = vmatpush1.msra.mxu0 0.0
    %432 = vmatprep.subr.mxu0 0.0
    %433 = vmatpush1.msra.mxu0 0.0
    %434 = vmatprep.subr.mxu0 0.0
    %435 = vmatpush1.msra.mxu0 0.0
    %436 = vmatprep.subr.mxu0 0.0
    %437 = vmatpush1.msra.mxu0 0.0
    %438 = vmatprep.subr.mxu0 0.0
    %439 = vmatpush1.msra.mxu0 0.0
    %440 = vmatprep.subr.mxu0 0.0
    %441 = vmatpush1.msra.mxu0 0.0
    %442 = vmatprep.subr.mxu0 0.0
    %443 = vmatpush1.msra.mxu0 0.0
    %444 = vmatprep.subr.mxu0 0.0
    %445 = vmatpush1.msra.mxu0 0.0
    %446 = vmatprep.subr.mxu0 0.0
    %447 = vmatpush1.msra.mxu0 0.0
    %448 = vmatprep.subr.mxu0 0.0
    %449 = vmatpush1.msra.mxu0 0.0
    %450 = vmatprep.subr.mxu0 0.0
    %451 = vmatpush1.msra.mxu0 0.0
    %452 = vmatprep.subr.mxu0 0.0
    %453 = vmatpush1.msra.mxu0 0.0
    %454 = vmatprep.subr.mxu0 0.0
    %455 = vmatpush1.msra.mxu0 0.0
    %456 = vmatprep.subr.mxu0 0.0
    %457 = vmatpush1.msra.mxu0 0.0
    %458 = vmatprep.subr.mxu0 0.0
    %459 = vmatpush1.msra.mxu0 0.0
    %460 = vmatprep.subr.mxu0 0.0
    %461 = vmatpush1.msra.mxu0 0.0
    %462 = vmatprep.subr.mxu0 0.0
    %463 = vmatpush1.msra.mxu0 0.0
    %464 = vmatprep.subr.mxu0 0.0
    %465 = vmatpush1.msra.mxu0 0.0
    %466 = vmatprep.subr.mxu0 0.0
    %467 = vmatpush1.msra.mxu0 0.0
    %468 = vmatprep.subr.mxu0 0.0
    %469 = vmatpush1.msra.mxu0 0.0
    %470 = vmatprep.subr.mxu0 0.0
    %471 = vmatpush1.msra.mxu0 0.0
    %472 = vmatprep.subr.mxu0 0.0
    %473 = vmatpush1.msra.mxu0 0.0
    %474 = vmatprep.subr.mxu0 0.0
    %475 = vmatpush1.msra.mxu0 0.0
    %476 = vmatprep.subr.mxu0 0.0
    %477 = vmatpush1.msra.mxu0 0.0
    %478 = vmatprep.subr.mxu0 0.0
    %479 = vmatpush1.msra.mxu0 0.0
    %480 = vmatprep.mubr.f32.mxu0 0.0
    %481 = vmatmul.mubr.f32.gmra.mrb[0].mxu0 %v393
    %v482 = vpop.f32.mrb[0].mxu0
    %v483 = vadd.f32 0.0, %v482
    %v484 = vpop.f32.mrb[0].mxu0
    %v485 = vadd.f32 0.0, %v484
    %486 = vmatprep.mubr.f32.mxu0 0.0
    %487 = vmatmul.mubr.f32.gmra.mrb[0].mxu0 %v396
    %v488 = vpop.f32.mrb[0].mxu0
    %v489 = vadd.f32 0.0, %v488
    %v490 = vpop.f32.mrb[0].mxu0
    %v491 = vadd.f32 0.0, %v490
    %492 = vmatprep.mubr.f32.mxu0 0.0
    %493 = vmatmul.mubr.f32.gmra.mrb[0].mxu0 %v399
    %v494 = vpop.f32.mrb[0].mxu0
    %v495 = vadd.f32 0.0, %v494
    %v496 = vpop.f32.mrb[0].mxu0
    %v497 = vadd.f32 0.0, %v496
    %498 = vmatprep.mubr.f32.mxu0 0.0
    %499 = vmatmul.mubr.f32.gmra.mrb[0].mxu0 %v402
    %v500 = vpop.f32.mrb[0].mxu0
    %v501 = vadd.f32 0.0, %v500
    %v502 = vpop.f32.mrb[0].mxu0
    %v503 = vadd.f32 0.0, %v502
    %504 = vmatprep.mubr.f32.mxu0 0.0
    %505 = vmatmul.mubr.f32.gmra.mrb[0].mxu0 %v405
    %v506 = vpop.f32.mrb[0].mxu0
    %v507 = vadd.f32 0.0, %v506
    %v508 = vpop.f32.mrb[0].mxu0
    %v509 = vadd.f32 0.0, %v508
    %510 = vmatprep.mubr.f32.mxu0 0.0
    %511 = vmatmul.mubr.f32.gmra.mrb[0].mxu0 %v408
    %v512 = vpop.f32.mrb[0].mxu0
    %v513 = vadd.f32 0.0, %v512
    %v514 = vpop.f32.mrb[0].mxu0
    %v515 = vadd.f32 0.0, %v514
    %516 = vmatprep.mubr.f32.mxu0 0.0
    %517 = vmatmul.mubr.f32.gmra.mrb[0].mxu0 %v411
    %v518 = vpop.f32.mrb[0].mxu0
    %v519 = vadd.f32 0.0, %v518
    %v520 = vpop.f32.mrb[0].mxu0
    %v521 = vadd.f32 0.0, %v520
    %522 = vmatprep.mubr.f32.mxu0 0.0
    %523 = vmatmul.mubr.f32.gmra.mrb[0].mxu0 %v414
    %v524 = vpop.f32.mrb[0].mxu0
    %v525 = vadd.f32 0.0, %v524
    %v526 = vpop.f32.mrb[0].mxu0
    %v527 = vadd.f32 0.0, %v526
    %528 = vdwg.mxu0
    %529 = vrot.lane.b32.xlu0 %v507, 126
    %v530 = vpop.permute.xlu0 %529
    %531 = vrot.lane.b32.xlu0 %v513, 126
    %v532 = vpop.permute.xlu0 %531
    %533 = vrot.lane.b32.xlu0 %v519, 126
    %v534 = vpop.permute.xlu0 %533
    %535 = vrot.lane.b32.xlu0 %v525, 126
    %v536 = vpop.permute.xlu0 %535
    %537 = vrot.lane.b32.xlu0 %v509, 126
    %v538 = vpop.permute.xlu0 %537
    %539 = vrot.lane.b32.xlu0 %v515, 126
    %v540 = vpop.permute.xlu0 %539
    %541 = vrot.lane.b32.xlu0 %v521, 126
    %v542 = vpop.permute.xlu0 %541
    %543 = vrot.lane.b32.xlu0 %v527, 126
    %v544 = vpop.permute.xlu0 %543
    %vm545 = vcmp.lt.s32.totalorder %v325, 126
    %v546 = vsel %vm545, %v530, %v538
    %v547 = vsel %vm545, %v532, %v540
    %v548 = vsel %vm545, %v534, %v542
    %v549 = vsel %vm545, %v536, %v544
    %v550 = vsel %vm545, %v538, %v530
    %v551 = vsel %vm545, %v540, %v532
    %v552 = vsel %vm545, %v542, %v534
    %v553 = vsel %vm545, %v544, %v536
    %v554 = vadd.f32 %v483, %v546
    %v555 = vadd.f32 %v485, %v550
    %v556 = vadd.f32 %v489, %v547
    %v557 = vadd.f32 %v491, %v551
    %v558 = vadd.f32 %v495, %v548
    %v559 = vadd.f32 %v497, %v552
    %v560 = vadd.f32 %v501, %v549
    %v561 = vadd.f32 %v503, %v553
    %s562 = scalar_lea.vmem %s4, 32
    %v563 = vld [vmem:[%s562] sm:$0xff]
    %v564 = vld [vmem:[%s562 + $0x8] sm:$0xff]
    %v565 = vld [vmem:[%s562 + $0x10] sm:$0xff]
    %v566 = vld [vmem:[%s562 + $0x18] sm:$0xff]
    %568 = vset.pattern.permute.xlu0 0
    %569 = vperm.xlu0 %568, %v563
    %v570 = vpop.permute.xlu0 %569
    %573 = vset.pattern.permute.xlu0 0
    %574 = vperm.xlu0 %573, %v564
    %v575 = vpop.permute.xlu0 %574
    %578 = vset.pattern.permute.xlu0 0
    %579 = vperm.xlu0 %578, %v565
    %v580 = vpop.permute.xlu0 %579
    %583 = vset.pattern.permute.xlu0 0
    %584 = vperm.xlu0 %583, %v566
    %v585 = vpop.permute.xlu0 %584
    %v587 = vadd.f32 %v554, %v570
    %v588 = vadd.f32 %v555, %v570
    %v589 = vadd.f32 %v556, %v575
    %v590 = vadd.f32 %v557, %v575
    %v591 = vadd.f32 %v558, %v580
    %v592 = vadd.f32 %v559, %v580
    %v593 = vadd.f32 %v560, %v585
    %v594 = vadd.f32 %v561, %v585
    %v595 = vmax.f32 %v587, 0.0
    %v596 = vmax.f32 %v588, 0.0
    %v597 = vmax.f32 %v589, 0.0
    %v598 = vmax.f32 %v590, 0.0
    %v599 = vmax.f32 %v591, 0.0
    %v600 = vmax.f32 %v592, 0.0
    %v601 = vmax.f32 %v593, 0.0
    %v602 = vmax.f32 %v594, 0.0
    %s603 = scalar_lea.vmem %s3, 128
    %v604 = vld [vmem:[%s603] sm:$0xff]
    %v605 = vld [vmem:[%s603 + $0x8] sm:$0xff]
    %v606 = vld [vmem:[%s603 + $0x10] sm:$0xff]
    %v607 = vld [vmem:[%s603 + $0x18] sm:$0xff]
    %v608 = vld [vmem:[%s603 + $0x20] sm:$0xff]
    %v609 = vld [vmem:[%s603 + $0x28] sm:$0xff]
    %v610 = vld [vmem:[%s603 + $0x30] sm:$0xff]
    %v611 = vld [vmem:[%s603 + $0x38] sm:$0xff]
    %v613 = vsel %vm170, %v604, 0
    %v616 = vsel %vm170, %v605, 0
    %v619 = vsel %vm170, %v606, 0
    %v622 = vsel %vm170, %v607, 0
    %v625 = vsel %vm170, %v608, 0
    %v628 = vsel %vm170, %v609, 0
    %v631 = vsel %vm170, %v610, 0
    %v634 = vsel %vm170, %v611, 0
    %636 = vmatprep.subr.mxu0 %v596
    %637 = vmatpush1.msra.mxu0 %v595
    %638 = vmatprep.subr.mxu0 %v598
    %639 = vmatpush1.msra.mxu0 %v597
    %640 = vmatprep.subr.mxu0 %v600
    %641 = vmatpush1.msra.mxu0 %v599
    %642 = vmatprep.subr.mxu0 %v602
    %643 = vmatpush1.msra.mxu0 %v601
    %644 = vmatprep.subr.mxu0 0.0
    %645 = vmatpush1.msra.mxu0 0.0
    %646 = vmatprep.subr.mxu0 0.0
    %647 = vmatpush1.msra.mxu0 0.0
    %648 = vmatprep.subr.mxu0 0.0
    %649 = vmatpush1.msra.mxu0 0.0
    %650 = vmatprep.subr.mxu0 0.0
    %651 = vmatpush1.msra.mxu0 0.0
    %652 = vmatprep.subr.mxu0 0.0
    %653 = vmatpush1.msra.mxu0 0.0
    %654 = vmatprep.subr.mxu0 0.0
    %655 = vmatpush1.msra.mxu0 0.0
    %656 = vmatprep.subr.mxu0 0.0
    %657 = vmatpush1.msra.mxu0 0.0
    %658 = vmatprep.subr.mxu0 0.0
    %659 = vmatpush1.msra.mxu0 0.0
    %660 = vmatprep.subr.mxu0 0.0
    %661 = vmatpush1.msra.mxu0 0.0
    %662 = vmatprep.subr.mxu0 0.0
    %663 = vmatpush1.msra.mxu0 0.0
    %664 = vmatprep.subr.mxu0 0.0
    %665 = vmatpush1.msra.mxu0 0.0
    %666 = vmatprep.subr.mxu0 0.0
    %667 = vmatpush1.msra.mxu0 0.0
    %668 = vmatprep.subr.mxu0 0.0
    %669 = vmatpush1.msra.mxu0 0.0
    %670 = vmatprep.subr.mxu0 0.0
    %671 = vmatpush1.msra.mxu0 0.0
    %672 = vmatprep.subr.mxu0 0.0
    %673 = vmatpush1.msra.mxu0 0.0
    %674 = vmatprep.subr.mxu0 0.0
    %675 = vmatpush1.msra.mxu0 0.0
    %676 = vmatprep.subr.mxu0 0.0
    %677 = vmatpush1.msra.mxu0 0.0
    %678 = vmatprep.subr.mxu0 0.0
    %679 = vmatpush1.msra.mxu0 0.0
    %680 = vmatprep.subr.mxu0 0.0
    %681 = vmatpush1.msra.mxu0 0.0
    %682 = vmatprep.subr.mxu0 0.0
    %683 = vmatpush1.msra.mxu0 0.0
    %684 = vmatprep.subr.mxu0 0.0
    %685 = vmatpush1.msra.mxu0 0.0
    %686 = vmatprep.subr.mxu0 0.0
    %687 = vmatpush1.msra.mxu0 0.0
    %688 = vmatprep.subr.mxu0 0.0
    %689 = vmatpush1.msra.mxu0 0.0
    %690 = vmatprep.subr.mxu0 0.0
    %691 = vmatpush1.msra.mxu0 0.0
    %692 = vmatprep.subr.mxu0 0.0
    %693 = vmatpush1.msra.mxu0 0.0
    %694 = vmatprep.subr.mxu0 0.0
    %695 = vmatpush1.msra.mxu0 0.0
    %696 = vmatprep.subr.mxu0 0.0
    %697 = vmatpush1.msra.mxu0 0.0
    %698 = vmatprep.subr.mxu0 0.0
    %699 = vmatpush1.msra.mxu0 0.0
    %700 = vmatprep.mubr.f32.mxu0 0.0
    %701 = vmatmul.mubr.f32.gmra.mrb[0].mxu0 %v613
    %v702 = vpop.f32.mrb[0].mxu0
    %v703 = vadd.f32 0.0, %v702
    %v704 = vpop.f32.mrb[0].mxu0
    %v705 = vadd.f32 0.0, %v704
    %706 = vmatprep.mubr.f32.mxu0 0.0
    %707 = vmatmul.mubr.f32.gmra.mrb[0].mxu0 %v616
    %v708 = vpop.f32.mrb[0].mxu0
    %v709 = vadd.f32 0.0, %v708
    %v710 = vpop.f32.mrb[0].mxu0
    %v711 = vadd.f32 0.0, %v710
    %712 = vmatprep.mubr.f32.mxu0 0.0
    %713 = vmatmul.mubr.f32.gmra.mrb[0].mxu0 %v619
    %v714 = vpop.f32.mrb[0].mxu0
    %v715 = vadd.f32 0.0, %v714
    %v716 = vpop.f32.mrb[0].mxu0
    %v717 = vadd.f32 0.0, %v716
    %718 = vmatprep.mubr.f32.mxu0 0.0
    %719 = vmatmul.mubr.f32.gmra.mrb[0].mxu0 %v622
    %v720 = vpop.f32.mrb[0].mxu0
    %v721 = vadd.f32 0.0, %v720
    %v722 = vpop.f32.mrb[0].mxu0
    %v723 = vadd.f32 0.0, %v722
    %724 = vmatprep.mubr.f32.mxu0 0.0
    %725 = vmatmul.mubr.f32.gmra.mrb[0].mxu0 %v625
    %v726 = vpop.f32.mrb[0].mxu0
    %v727 = vadd.f32 0.0, %v726
    %v728 = vpop.f32.mrb[0].mxu0
    %v729 = vadd.f32 0.0, %v728
    %730 = vmatprep.mubr.f32.mxu0 0.0
    %731 = vmatmul.mubr.f32.gmra.mrb[0].mxu0 %v628
    %v732 = vpop.f32.mrb[0].mxu0
    %v733 = vadd.f32 0.0, %v732
    %v734 = vpop.f32.mrb[0].mxu0
    %v735 = vadd.f32 0.0, %v734
    %736 = vmatprep.mubr.f32.mxu0 0.0
    %737 = vmatmul.mubr.f32.gmra.mrb[0].mxu0 %v631
    %v738 = vpop.f32.mrb[0].mxu0
    %v739 = vadd.f32 0.0, %v738
    %v740 = vpop.f32.mrb[0].mxu0
    %v741 = vadd.f32 0.0, %v740
    %742 = vmatprep.mubr.f32.mxu0 0.0
    %743 = vmatmul.mubr.f32.gmra.mrb[0].mxu0 %v634
    %v744 = vpop.f32.mrb[0].mxu0
    %v745 = vadd.f32 0.0, %v744
    %v746 = vpop.f32.mrb[0].mxu0
    %v747 = vadd.f32 0.0, %v746
    %748 = vdwg.mxu0
    %749 = vrot.lane.b32.xlu0 %v727, 124
    %v750 = vpop.permute.xlu0 %749
    %751 = vrot.lane.b32.xlu0 %v733, 124
    %v752 = vpop.permute.xlu0 %751
    %753 = vrot.lane.b32.xlu0 %v739, 124
    %v754 = vpop.permute.xlu0 %753
    %755 = vrot.lane.b32.xlu0 %v745, 124
    %v756 = vpop.permute.xlu0 %755
    %757 = vrot.lane.b32.xlu0 %v729, 124
    %v758 = vpop.permute.xlu0 %757
    %759 = vrot.lane.b32.xlu0 %v735, 124
    %v760 = vpop.permute.xlu0 %759
    %761 = vrot.lane.b32.xlu0 %v741, 124
    %v762 = vpop.permute.xlu0 %761
    %763 = vrot.lane.b32.xlu0 %v747, 124
    %v764 = vpop.permute.xlu0 %763
    %vm765 = vcmp.lt.s32.totalorder %v325, 124
    %v766 = vsel %vm765, %v750, %v758
    %v767 = vsel %vm765, %v752, %v760
    %v768 = vsel %vm765, %v754, %v762
    %v769 = vsel %vm765, %v756, %v764
    %v770 = vsel %vm765, %v758, %v750
    %v771 = vsel %vm765, %v760, %v752
    %v772 = vsel %vm765, %v762, %v754
    %v773 = vsel %vm765, %v764, %v756
    %v774 = vadd.f32 %v703, %v766
    %v775 = vadd.f32 %v705, %v770
    %v776 = vadd.f32 %v709, %v767
    %v777 = vadd.f32 %v711, %v771
    %v778 = vadd.f32 %v715, %v768
    %v779 = vadd.f32 %v717, %v772
    %v780 = vadd.f32 %v721, %v769
    %v781 = vadd.f32 %v723, %v773
    %s782 = scalar_lea.vmem %s4, 64
    %v783 = vld [vmem:[%s782] sm:$0xff]
    %v784 = vld [vmem:[%s782 + $0x8] sm:$0xff]
    %v785 = vld [vmem:[%s782 + $0x10] sm:$0xff]
    %v786 = vld [vmem:[%s782 + $0x18] sm:$0xff]
    %788 = vset.pattern.permute.xlu0 0
    %789 = vperm.xlu0 %788, %v783
    %v790 = vpop.permute.xlu0 %789
    %793 = vset.pattern.permute.xlu0 0
    %794 = vperm.xlu0 %793, %v784
    %v795 = vpop.permute.xlu0 %794
    %798 = vset.pattern.permute.xlu0 0
    %799 = vperm.xlu0 %798, %v785
    %v800 = vpop.permute.xlu0 %799
    %803 = vset.pattern.permute.xlu0 0
    %804 = vperm.xlu0 %803, %v786
    %v805 = vpop.permute.xlu0 %804
    %v807 = vadd.f32 %v774, %v790
    %v808 = vadd.f32 %v775, %v790
    %v809 = vadd.f32 %v776, %v795
    %v810 = vadd.f32 %v777, %v795
    %v811 = vadd.f32 %v778, %v800
    %v812 = vadd.f32 %v779, %v800
    %v813 = vadd.f32 %v780, %v805
    %v814 = vadd.f32 %v781, %v805
    %v815 = vmax.f32 %v807, 0.0
    %v816 = vmax.f32 %v808, 0.0
    %v817 = vmax.f32 %v809, 0.0
    %v818 = vmax.f32 %v810, 0.0
    %v819 = vmax.f32 %v811, 0.0
    %v820 = vmax.f32 %v812, 0.0
    %v821 = vmax.f32 %v813, 0.0
    %v822 = vmax.f32 %v814, 0.0
    %s823 = scalar_lea.vmem %s3, 192
    %v824 = vld [vmem:[%s823] sm:$0xff]
    %v825 = vld [vmem:[%s823 + $0x8] sm:$0xff]
    %v826 = vld [vmem:[%s823 + $0x10] sm:$0xff]
    %v827 = vld [vmem:[%s823 + $0x18] sm:$0xff]
    %v828 = vld [vmem:[%s823 + $0x20] sm:$0xff]
    %v829 = vld [vmem:[%s823 + $0x28] sm:$0xff]
    %v830 = vld [vmem:[%s823 + $0x30] sm:$0xff]
    %v831 = vld [vmem:[%s823 + $0x38] sm:$0xff]
    %v833 = vsel %vm170, %v824, 0
    %v836 = vsel %vm170, %v825, 0
    %v839 = vsel %vm170, %v826, 0
    %v842 = vsel %vm170, %v827, 0
    %v845 = vsel %vm170, %v828, 0
    %v848 = vsel %vm170, %v829, 0
    %v851 = vsel %vm170, %v830, 0
    %v854 = vsel %vm170, %v831, 0
    %856 = vmatprep.subr.mxu0 %v816
    %857 = vmatpush1.msra.mxu0 %v815
    %858 = vmatprep.subr.mxu0 %v818
    %859 = vmatpush1.msra.mxu0 %v817
    %860 = vmatprep.subr.mxu0 %v820
    %861 = vmatpush1.msra.mxu0 %v819
    %862 = vmatprep.subr.mxu0 %v822
    %863 = vmatpush1.msra.mxu0 %v821
    %864 = vmatprep.subr.mxu0 0.0
    %865 = vmatpush1.msra.mxu0 0.0
    %866 = vmatprep.subr.mxu0 0.0
    %867 = vmatpush1.msra.mxu0 0.0
    %868 = vmatprep.subr.mxu0 0.0
    %869 = vmatpush1.msra.mxu0 0.0
    %870 = vmatprep.subr.mxu0 0.0
    %871 = vmatpush1.msra.mxu0 0.0
    %872 = vmatprep.subr.mxu0 0.0
    %873 = vmatpush1.msra.mxu0 0.0
    %874 = vmatprep.subr.mxu0 0.0
    %875 = vmatpush1.msra.mxu0 0.0
    %876 = vmatprep.subr.mxu0 0.0
    %877 = vmatpush1.msra.mxu0 0.0
    %878 = vmatprep.subr.mxu0 0.0
    %879 = vmatpush1.msra.mxu0 0.0
    %880 = vmatprep.subr.mxu0 0.0
    %881 = vmatpush1.msra.mxu0 0.0
    %882 = vmatprep.subr.mxu0 0.0
    %883 = vmatpush1.msra.mxu0 0.0
    %884 = vmatprep.subr.mxu0 0.0
    %885 = vmatpush1.msra.mxu0 0.0
    %886 = vmatprep.subr.mxu0 0.0
    %887 = vmatpush1.msra.mxu0 0.0
    %888 = vmatprep.subr.mxu0 0.0
    %889 = vmatpush1.msra.mxu0 0.0
    %890 = vmatprep.subr.mxu0 0.0
    %891 = vmatpush1.msra.mxu0 0.0
    %892 = vmatprep.subr.mxu0 0.0
    %893 = vmatpush1.msra.mxu0 0.0
    %894 = vmatprep.subr.mxu0 0.0
    %895 = vmatpush1.msra.mxu0 0.0
    %896 = vmatprep.subr.mxu0 0.0
    %897 = vmatpush1.msra.mxu0 0.0
    %898 = vmatprep.subr.mxu0 0.0
    %899 = vmatpush1.msra.mxu0 0.0
    %900 = vmatprep.subr.mxu0 0.0
    %901 = vmatpush1.msra.mxu0 0.0
    %902 = vmatprep.subr.mxu0 0.0
    %903 = vmatpush1.msra.mxu0 0.0
    %904 = vmatprep.subr.mxu0 0.0
    %905 = vmatpush1.msra.mxu0 0.0
    %906 = vmatprep.subr.mxu0 0.0
    %907 = vmatpush1.msra.mxu0 0.0
    %908 = vmatprep.subr.mxu0 0.0
    %909 = vmatpush1.msra.mxu0 0.0
    %910 = vmatprep.subr.mxu0 0.0
    %911 = vmatpush1.msra.mxu0 0.0
    %912 = vmatprep.subr.mxu0 0.0
    %913 = vmatpush1.msra.mxu0 0.0
    %914 = vmatprep.subr.mxu0 0.0
    %915 = vmatpush1.msra.mxu0 0.0
    %916 = vmatprep.subr.mxu0 0.0
    %917 = vmatpush1.msra.mxu0 0.0
    %918 = vmatprep.subr.mxu0 0.0
    %919 = vmatpush1.msra.mxu0 0.0
    %920 = vmatprep.mubr.f32.mxu0 0.0
    %921 = vmatmul.mubr.f32.gmra.mrb[0].mxu0 %v833
    %v922 = vpop.f32.mrb[0].mxu0
    %v923 = vadd.f32 0.0, %v922
    %v924 = vpop.f32.mrb[0].mxu0
    %v925 = vadd.f32 0.0, %v924
    %926 = vmatprep.mubr.f32.mxu0 0.0
    %927 = vmatmul.mubr.f32.gmra.mrb[0].mxu0 %v836
    %v928 = vpop.f32.mrb[0].mxu0
    %v929 = vadd.f32 0.0, %v928
    %v930 = vpop.f32.mrb[0].mxu0
    %v931 = vadd.f32 0.0, %v930
    %932 = vmatprep.mubr.f32.mxu0 0.0
    %933 = vmatmul.mubr.f32.gmra.mrb[0].mxu0 %v839
    %v934 = vpop.f32.mrb[0].mxu0
    %v935 = vadd.f32 0.0, %v934
    %v936 = vpop.f32.mrb[0].mxu0
    %v937 = vadd.f32 0.0, %v936
    %938 = vmatprep.mubr.f32.mxu0 0.0
    %939 = vmatmul.mubr.f32.gmra.mrb[0].mxu0 %v842
    %v940 = vpop.f32.mrb[0].mxu0
    %v941 = vadd.f32 0.0, %v940
    %v942 = vpop.f32.mrb[0].mxu0
    %v943 = vadd.f32 0.0, %v942
    %944 = vmatprep.mubr.f32.mxu0 0.0
    %945 = vmatmul.mubr.f32.gmra.mrb[0].mxu0 %v845
    %v946 = vpop.f32.mrb[0].mxu0
    %v947 = vadd.f32 0.0, %v946
    %v948 = vpop.f32.mrb[0].mxu0
    %v949 = vadd.f32 0.0, %v948
    %950 = vmatprep.mubr.f32.mxu0 0.0
    %951 = vmatmul.mubr.f32.gmra.mrb[0].mxu0 %v848
    %v952 = vpop.f32.mrb[0].mxu0
    %v953 = vadd.f32 0.0, %v952
    %v954 = vpop.f32.mrb[0].mxu0
    %v955 = vadd.f32 0.0, %v954
    %956 = vmatprep.mubr.f32.mxu0 0.0
    %957 = vmatmul.mubr.f32.gmra.mrb[0].mxu0 %v851
    %v958 = vpop.f32.mrb[0].mxu0
    %v959 = vadd.f32 0.0, %v958
    %v960 = vpop.f32.mrb[0].mxu0
    %v961 = vadd.f32 0.0, %v960
    %962 = vmatprep.mubr.f32.mxu0 0.0
    %963 = vmatmul.mubr.f32.gmra.mrb[0].mxu0 %v854
    %v964 = vpop.f32.mrb[0].mxu0
    %v965 = vadd.f32 0.0, %v964
    %v966 = vpop.f32.mrb[0].mxu0
    %v967 = vadd.f32 0.0, %v966
    %968 = vdwg.mxu0
    %969 = vrot.lane.b32.xlu0 %v947, 120
    %v970 = vpop.permute.xlu0 %969
    %971 = vrot.lane.b32.xlu0 %v953, 120
    %v972 = vpop.permute.xlu0 %971
    %973 = vrot.lane.b32.xlu0 %v959, 120
    %v974 = vpop.permute.xlu0 %973
    %975 = vrot.lane.b32.xlu0 %v965, 120
    %v976 = vpop.permute.xlu0 %975
    %977 = vrot.lane.b32.xlu0 %v949, 120
    %v978 = vpop.permute.xlu0 %977
    %979 = vrot.lane.b32.xlu0 %v955, 120
    %v980 = vpop.permute.xlu0 %979
    %981 = vrot.lane.b32.xlu0 %v961, 120
    %v982 = vpop.permute.xlu0 %981
    %983 = vrot.lane.b32.xlu0 %v967, 120
    %v984 = vpop.permute.xlu0 %983
    %vm985 = vcmp.lt.s32.totalorder %v325, 120
    %v986 = vsel %vm985, %v970, %v978
    %v987 = vsel %vm985, %v972, %v980
    %v988 = vsel %vm985, %v974, %v982
    %v989 = vsel %vm985, %v976, %v984
    %v990 = vsel %vm985, %v978, %v970
    %v991 = vsel %vm985, %v980, %v972
    %v992 = vsel %vm985, %v982, %v974
    %v993 = vsel %vm985, %v984, %v976
    %v994 = vadd.f32 %v923, %v986
    %v995 = vadd.f32 %v925, %v990
    %v996 = vadd.f32 %v929, %v987
    %v997 = vadd.f32 %v931, %v991
    %v998 = vadd.f32 %v935, %v988
    %v999 = vadd.f32 %v937, %v992
    %v1000 = vadd.f32 %v941, %v989
    %v1001 = vadd.f32 %v943, %v993
    %s1002 = scalar_lea.vmem %s4, 96
    %v1003 = vld [vmem:[%s1002] sm:$0xff]
    %v1004 = vld [vmem:[%s1002 + $0x8] sm:$0xff]
    %v1005 = vld [vmem:[%s1002 + $0x10] sm:$0xff]
    %v1006 = vld [vmem:[%s1002 + $0x18] sm:$0xff]
    %1008 = vset.pattern.permute.xlu0 0
    %1009 = vperm.xlu0 %1008, %v1003
    %v1010 = vpop.permute.xlu0 %1009
    %1013 = vset.pattern.permute.xlu0 0
    %1014 = vperm.xlu0 %1013, %v1004
    %v1015 = vpop.permute.xlu0 %1014
    %1018 = vset.pattern.permute.xlu0 0
    %1019 = vperm.xlu0 %1018, %v1005
    %v1020 = vpop.permute.xlu0 %1019
    %1023 = vset.pattern.permute.xlu0 0
    %1024 = vperm.xlu0 %1023, %v1006
    %v1025 = vpop.permute.xlu0 %1024
    %v1027 = vadd.f32 %v994, %v1010
    %v1028 = vadd.f32 %v995, %v1010
    %v1029 = vadd.f32 %v996, %v1015
    %v1030 = vadd.f32 %v997, %v1015
    %v1031 = vadd.f32 %v998, %v1020
    %v1032 = vadd.f32 %v999, %v1020
    %v1033 = vadd.f32 %v1000, %v1025
    %v1034 = vadd.f32 %v1001, %v1025
    %v1035 = vmax.f32 %v1027, 0.0
    %v1036 = vmax.f32 %v1028, 0.0
    %v1037 = vmax.f32 %v1029, 0.0
    %v1038 = vmax.f32 %v1030, 0.0
    %v1039 = vmax.f32 %v1031, 0.0
    %v1040 = vmax.f32 %v1032, 0.0
    %v1041 = vmax.f32 %v1033, 0.0
    %v1042 = vmax.f32 %v1034, 0.0
    %v1043 = vld [vmem:[%s5] sm:$0xff]
    %v1044 = vld [vmem:[%s5 + $0x8] sm:$0xff]
    %v1045 = vld [vmem:[%s5 + $0x10] sm:$0xff]
    %v1046 = vld [vmem:[%s5 + $0x18] sm:$0xff]
    %1048 = vset.pattern.permute.xlu0 0
    %1049 = vperm.xlu0 %1048, %v1043
    %v1050 = vpop.permute.xlu0 %1049
    %1053 = vset.pattern.permute.xlu0 0
    %1054 = vperm.xlu0 %1053, %v1044
    %v1055 = vpop.permute.xlu0 %1054
    %1058 = vset.pattern.permute.xlu0 0
    %1059 = vperm.xlu0 %1058, %v1045
    %v1060 = vpop.permute.xlu0 %1059
    %1063 = vset.pattern.permute.xlu0 0
    %1064 = vperm.xlu0 %1063, %v1046
    %v1065 = vpop.permute.xlu0 %1064
    %v1067 = vmul.f32 %v1035, %v1050
    %v1068 = vmul.f32 %v1036, %v1050
    %v1069 = vmul.f32 %v1037, %v1055
    %v1070 = vmul.f32 %v1038, %v1055
    %v1071 = vmul.f32 %v1039, %v1060
    %v1072 = vmul.f32 %v1040, %v1060
    %v1073 = vmul.f32 %v1041, %v1065
    %v1074 = vmul.f32 %v1042, %v1065
    %v1075 = vadd.f32 %v1067, %v1069
    %v1076 = vadd.f32 %v1075, %v1071
    %v1077 = vadd.f32 %v1076, %v1073
    %v1078 = vrot.slane %v1077, 4
    %v1079 = vadd.f32 %v1077, %v1078
    %v1080 = vrot.slane %v1079, 2
    %v1081 = vadd.f32 %v1079, %v1080
    %v1082 = vrot.slane %v1081, 1
    %v1083 = vadd.f32 %v1081, %v1082
    %v1084 = vadd.f32 %v1068, %v1070
    %v1085 = vadd.f32 %v1084, %v1072
    %v1086 = vadd.f32 %v1085, %v1074
    %v1087 = vrot.slane %v1086, 4
    %v1088 = vadd.f32 %v1086, %v1087
    %v1089 = vrot.slane %v1088, 2
    %v1090 = vadd.f32 %v1088, %v1089
    %v1091 = vrot.slane %v1090, 1
    %v1092 = vadd.f32 %v1090, %v1091
    %s1093 = sld [smem:[#allocation2]]
    %v1094 = vstv %s1093
    %v1095 = vadd.f32 %v1083, %v1094
    %v1096 = vadd.f32 %v1092, %v1094
    %v1097 = vxor.u32 %v1095, 2147483648
    %v1098 = vxor.u32 %v1096, 2147483648
    %v1099 = vmul.f32 %v1097, 1.442695
    %v1100 = vpow.pop %v1099
    %v1101 = vmul.f32 %v1098, 1.442695
    %v1102 = vpow.pop %v1101
    %v1103 = vadd.f32 %v1100, 1.0
    %v1104 = vadd.f32 %v1102, 1.0
    %v1105 = vrcp.pop %v1103
    %v1106 = vmul.f32 1.0, %v1105
    %v1107 = vrcp.pop %v1104
    %v1108 = vmul.f32 1.0, %v1107
    %1109 = vst [vmem:[#allocation3] sm:$0x1] %v1106
    %1110 = vst [vmem:[#allocation3 + $0x1] sm:$0x1] %v1108
    // Predicated region
    $region30: #{tpu_custom_call.1} parent=1 // pred_check
      _
    $region31: #{tpu_custom_call.1} parent=1 // pred_check_branch
      %1112 = sbr.rel (0) target = $region33
    $region32: #{tpu_custom_call.1} parent=1 // pred_region
      %s1114 = ssub.s32 32, 32
      %1115 = vsyncadd [#allocation4], %s1114
      %s1117 = sshll.u32 [#allocation3], 4
      %s1118 = int_to_ptr.vmem [resolvable:$true] %s1117
      %1120 = dma.vmem_to_hbm [thread:$0]  %s1118, 32, %s7, [#allocation4]
    $region33: #{tpu_custom_call.1} parent=1 // pred_fallthru
      _
    // Predicated region
    $region34: #{tpu_custom_call.1} parent=1 // pred_check
      _
    $region35: #{tpu_custom_call.1} parent=1 // pred_check_branch
      %1122 = sbr.rel (0) target = $region37
    $region36: #{tpu_custom_call.1} parent=1 // pred_region
      %1123 = dma.done [#allocation4], 32
    $region37: #{tpu_custom_call.1} parent=1 // pred_fallthru
      _
    %1124 = vsyncpa [#allocation4], 1

</llo_original>
